<compile_context>
chip_gen: v7x
topology: tpu7x:2x2x1
jax: 0.10.0
libtpu: 0.0.40
codegen_flags: <defaults>
</compile_context>

<pallas_src>
import functools

import jax
import jax.numpy as jnp
from jax.experimental import pallas as pl
from jax.experimental.pallas import tpu as pltpu


def _round_up(n, m):
    return ((n + m - 1) // m) * m


# ----------------------------- Pallas kernel ------------------------------ #

def cinn_kernel(xy_ref, wbig_ref, w23_ref, whead_ref, q1_ref, bias_ref,
                out_ref, logdet_ref, *, n_features, hidden):
    """Fused CINN forward for one batch tile (block-diagonal coupling nets)."""
    F = n_features
    H2 = 2 * hidden

    u = xy_ref[...]                       # (TB, F + C)  = [x | y]
    b1 = bias_ref[0:1, :]                 # (1, 2H)
    b2 = bias_ref[1:2, :]
    b3 = bias_ref[2:3, :]
    bh = bias_ref[3:4, :2 * F]            # (1, 2F)

    # 1) Q0 permutation + block-structured first Linear in a single matmul:
    #    columns [0:F] give x @ Q0, columns [F:] give layer-1 preactivations
    #    of both coupling nets ([ha | hb]).
    c1 = jnp.dot(u, wbig_ref[...], preferred_element_type=jnp.float32)   # (TB, F + 2H)
    xperm = c1[:, :F]
    h = jnp.maximum(c1[:, F:] + b1, 0.0)

    # 2-3) block-diagonal hidden layers (ReLU; Dropout = identity in eval)
    h = jnp.maximum(
        jnp.dot(h, w23_ref[:H2, :], preferred_element_type=jnp.float32) + b2, 0.0)
    h = jnp.maximum(
        jnp.dot(h, w23_ref[H2:, :], preferred_element_type=jnp.float32) + b3, 0.0)

    # 4) fused logS / T heads of both nets; columns are pre-swapped so the
    #    coupling's cross-use (Sa<->Sb, Ta<->Tb) is already lane-aligned.
    head = jnp.dot(h, whead_ref[...], preferred_element_type=jnp.float32) + bh  # (TB, 2F)
    S = jnp.tanh(head[:, :F])             # [log_Sb | log_Sa]
    T = head[:, F:]                       # [Tb     | Ta]

    # Za = Xa*exp(log_Sb)+Tb ; Zb = Xb*exp(log_Sa)+Ta  -> done jointly
    z = xperm * jnp.exp(S) + T

    # 5) final RandomPermute: single z @ Q1
    out_ref[...] = jnp.dot(z, q1_ref[...], preferred_element_type=jnp.float32)

    # logdet = log_Sa.sum(-1) + log_Sb.sum(-1)  (sum over all F columns of S)
    # TODO(synk): logdet last dim is 1 (masked store); negligible at this size.
    logdet_ref[...] = jnp.sum(S, axis=-1, keepdims=True)


# ------------------------------ JAX wrapper ------------------------------- #

def cinn_forward(x, y, params, *, n_features, hidden):
    """params: (W_big, W23, W_head, Q1, biases) as built by pack_params."""
    W_big, W23, W_head, Q1p, biases = params
    B = x.shape[0]
    F = n_features
    C = y.shape[1]

    xy = jnp.concatenate([x, y], axis=1).astype(jnp.float32)   # (B, F + C)

    # Batch grid: whole (tiny) batch in one tile here; scales to large B with
    # weights VMEM-resident and the batch axis marked "parallel" (v7x: 2 TCs).
    TB = min(512, _round_up(B, 8))
    Bp = _round_up(B, TB)
    if Bp != B:
        xy = jnp.pad(xy, ((0, Bp - B), (0, 0)))
    grid = (Bp // TB,)

    kern = functools.partial(cinn_kernel, n_features=F, hidden=hidden)
    full = lambda arr: pl.BlockSpec(arr.shape, lambda i: (0, 0))

    out, logdet = pl.pallas_call(
        kern,
        out_shape=(jax.ShapeDtypeStruct((Bp, F), jnp.float32),
                   jax.ShapeDtypeStruct((Bp, 1), jnp.float32)),
        grid=grid,
        in_specs=[pl.BlockSpec((TB, F + C), lambda i: (i, 0)),
                  full(W_big), full(W23), full(W_head), full(Q1p), full(biases)],
        out_specs=(pl.BlockSpec((TB, F), lambda i: (i, 0)),
                   pl.BlockSpec((TB, 1), lambda i: (i, 0))),
        compiler_params=pltpu.CompilerParams(dimension_semantics=("parallel",)),
    )(xy, W_big, W23, W_head, Q1p, biases)

    return out[:B], logdet[:B, 0]


# --------------------------- parameter building ---------------------------- #

def init_linear(key, n_in, n_out):
    """Deterministic init mimicking torch.nn.Linear (uniform +-1/sqrt(fan_in)),
    weight stored as (in, out)."""
    kw, kb = jax.random.split(key)
    bound = 1.0 / float(n_in) ** 0.5
    w = jax.random.uniform(kw, (n_in, n_out), jnp.float32, -bound, bound)
    b = jax.random.uniform(kb, (1, n_out), jnp.float32, -bound, bound)
    return w, b


def init_coupling_network(key, in_features, hidden_sizes, out_features):
    """Reference-form params: (w1, b1, w2, b2, w3, b3, ws, bs, wt, bt)."""
    ks = jax.random.split(key, 5)
    w1, b1 = init_linear(ks[0], in_features, hidden_sizes[0])
    w2, b2 = init_linear(ks[1], hidden_sizes[0], hidden_sizes[1])
    w3, b3 = init_linear(ks[2], hidden_sizes[1], hidden_sizes[2])
    ws, bs = init_linear(ks[3], hidden_sizes[2], out_features)
    wt, bt = init_linear(ks[4], hidden_sizes[2], out_features)
    return (w1, b1, w2, b2, w3, b3, ws, bs, wt, bt)


def random_permute_matrix(key, D):
    """Q[randperm(D), randperm(D)] = 1  (a permutation matrix)."""
    k1, k2 = jax.random.split(key)
    rp = jax.random.permutation(k1, D)
    cp = jax.random.permutation(k2, D)
    return jnp.zeros((D, D), jnp.float32).at[rp, cp].set(1.0)


def _blockdiag(a, b):
    z01 = jnp.zeros((a.shape[0], b.shape[1]), jnp.float32)
    z10 = jnp.zeros((b.shape[0], a.shape[1]), jnp.float32)
    return jnp.concatenate(
        [jnp.concatenate([a, z01], axis=1),
         jnp.concatenate([z10, b], axis=1)], axis=0)


def pack_params(Q0, Q1, cna, cnb, n_features, condition_features, split_a):
    """Pack both coupling nets + permutations into 5 fused arrays + bias slab."""
    F, C = n_features, condition_features
    Fa, Fb = split_a, F - split_a
    w1a, b1a, w2a, b2a, w3a, b3a, wsa, bsa, wta, bta = cna
    w1b, b1b, w2b, b2b, w3b, b3b, wsb, bsb, wtb, btb = cnb
    H = w1a.shape[1]
    H2 = 2 * H

    # W_big: (F+C, F+2H). Cols [0:F] = Q0 (x rows) / 0 (y rows) -> x@Q0.
    # Cols [F:F+H] = layer-1 of CNa with Q0a folded; [F+H:] = CNb with Q0b folded.
    Q0a, Q0b = Q0[:, :Fa], Q0[:, Fa:]
    x_rows = jnp.concatenate([Q0, Q0a @ w1a[:Fa], Q0b @ w1b[:Fb]], axis=1)
    y_rows = jnp.concatenate(
        [jnp.zeros((C, F), jnp.float32), w1a[Fa:], w1b[Fb:]], axis=1)
    W_big = jnp.concatenate([x_rows, y_rows], axis=0)

    # W2 and W3 as block-diagonals, stacked along rows: (4H, 2H).
    W23 = jnp.concatenate([_blockdiag(w2a, w2b), _blockdiag(w3a, w3b)], axis=0)

    # Fused head (2H, 2F); column order [logSb(Fa) | logSa(Fb) | Tb(Fa) | Ta(Fb)].
    zHa = jnp.zeros((H, Fa), jnp.float32)
    zHb = jnp.zeros((H, Fb), jnp.float32)
    top = jnp.concatenate([zHa, wsa, zHa, wta], axis=1)   # rows from ha
    bot = jnp.concatenate([wsb, zHb, wtb, zHb], axis=1)   # rows from hb
    W_head = jnp.concatenate([top, bot], axis=0)
    b_head = jnp.concatenate([bsb, bsa, btb, bta], axis=1)   # (1, 2F)

    # Bias slab (4, 2H): rows = [b1 | b2 | b3 | b_head (zero-padded)].
    biases = jnp.concatenate([
        jnp.concatenate([b1a, b1b], axis=1),
        jnp.concatenate([b2a, b2b], axis=1),
        jnp.concatenate([b3a, b3b], axis=1),
        jnp.concatenate([b_head, jnp.zeros((1, H2 - 2 * F), jnp.float32)], axis=1),
    ], axis=0)

    return (W_big, W23, W_head, Q1, biases)


# ----------------------------- pure-JAX reference -------------------------- #

def ref_cn(inp, p):
    w1, b1, w2, b2, w3, b3, ws, bs, wt, bt = p
    h = jax.nn.relu(inp @ w1 + b1)
    h = jax.nn.relu(h @ w2 + b2)
    h = jax.nn.relu(h @ w3 + b3)
    return jnp.tanh(h @ ws + bs), h @ wt + bt


def ref_forward(x, y, Q0, Q1, cna, cnb, split_a):
    x = x @ Q0
    xa, xb = x[:, :split_a], x[:, split_a:]
    logSa, Ta = ref_cn(jnp.concatenate([xa, y], axis=1), cna)
    logSb, Tb = ref_cn(jnp.concatenate([xb, y], axis=1), cnb)
    za = xa * jnp.exp(logSb) + Tb
    zb = xb * jnp.exp(logSa) + Ta
    logdet = logSa.sum(-1) + logSb.sum(-1)
    z = jnp.concatenate([za, zb], axis=1)
    return z @ Q1, logdet


# ----------------------------------- main ---------------------------------- #

if __name__ == "__main__":
    # Small CINN: n_features=16, condition_features=8, n_blocks=1,
    # coupling_network_layers=[32, 32, 32], batch=8.
    B = 8
    n_features = 16
    condition_features = 8
    hidden = (32, 32, 32)
    split_a = n_features // 2            # Fa
    split_b = n_features - split_a       # Fb

    root = jax.random.PRNGKey(0)
    k_x, k_y, k_q0, k_q1, k_cna, k_cnb = jax.random.split(root, 6)

    X = jax.random.normal(k_x, (B, n_features), jnp.float32)
    Y = jax.random.normal(k_y, (B, condition_features), jnp.float32)

    Q0 = random_permute_matrix(k_q0, n_features)
    Q1 = random_permute_matrix(k_q1, n_features)

    cna = init_coupling_network(k_cna, split_a + condition_features, hidden, split_b)
    cnb = init_coupling_network(k_cnb, split_b + condition_features, hidden, split_a)

    params = pack_params(Q0, Q1, cna, cnb, n_features, condition_features, split_a)

    z_out, logdet = cinn_forward(X, Y, params,
                                 n_features=n_features, hidden=hidden[0])
    jax.block_until_ready((z_out, logdet))

    # Verify against pure-JAX reference of the PyTorch forward.
    z_ref, logdet_ref = ref_forward(X, Y, Q0, Q1, cna, cnb, split_a)
    assert jnp.allclose(z_out, z_ref, rtol=1e-4, atol=1e-4), "output mismatch"
    assert jnp.allclose(logdet, logdet_ref, rtol=1e-4, atol=1e-4), "logdet mismatch"

    # TODO(synk): Dropout(0.5) is identity here (eval-mode semantics); training-mode
    # stochastic dropout would need pltpu.prng_* inside the kernel.
    # NOTE: for large batch/feature sizes, cast MXU operands to bf16 (f32 accumulate)
    # on v6e/v7x; kept f32 here since the workload is MXU-latency-bound, not BW-bound.
    print("KERNEL_OK")
</pallas_src>

<mosaic_0001>
module attributes {stable_mosaic.version = 11 : i64} {
  func.func @cinn_kernel(%arg0: i32, %arg1: memref<8x24xf32, #tpu.memory_space<vmem>>, %arg2: memref<24x80xf32, #tpu.memory_space<vmem>>, %arg3: memref<128x64xf32, #tpu.memory_space<vmem>>, %arg4: memref<64x32xf32, #tpu.memory_space<vmem>>, %arg5: memref<16x16xf32, #tpu.memory_space<vmem>>, %arg6: memref<4x64xf32, #tpu.memory_space<vmem>>, %arg7: memref<8x16xf32, #tpu.memory_space<vmem>>, %arg8: memref<8x1xf32, #tpu.memory_space<vmem>>) attributes {dimension_semantics = [#tpu.dimension_semantics<parallel>], iteration_bounds = array<i64: 1>, scalar_prefetch = 0 : i64, scratch_operands = 0 : i64, tpu.core_type = #tpu.core_type<tc>, window_params = [{transform_indices = @transform_0, window_bounds = array<i64: 8, 24>}, {pipeline_mode = #tpu.pipeline_mode<synchronous>, transform_indices = @transform_1, window_bounds = array<i64: 24, 80>}, {pipeline_mode = #tpu.pipeline_mode<synchronous>, transform_indices = @transform_2, window_bounds = array<i64: 128, 64>}, {pipeline_mode = #tpu.pipeline_mode<synchronous>, transform_indices = @transform_3, window_bounds = array<i64: 64, 32>}, {pipeline_mode = #tpu.pipeline_mode<synchronous>, transform_indices = @transform_4, window_bounds = array<i64: 16, 16>}, {pipeline_mode = #tpu.pipeline_mode<synchronous>, transform_indices = @transform_5, window_bounds = array<i64: 4, 64>}, {transform_indices = @transform_6, window_bounds = array<i64: 8, 16>}, {transform_indices = @transform_7, window_bounds = array<i64: 8, 1>}]} {
    %c0 = arith.constant 0 : index
    %c0_0 = arith.constant 0 : index
    %0 = vector.load %arg1[%c0, %c0_0] : memref<8x24xf32, #tpu.memory_space<vmem>>, vector<8x24xf32>
    %c0_1 = arith.constant 0 : index
    %c0_2 = arith.constant 0 : index
    %1 = vector.load %arg6[%c0_1, %c0_2] : memref<4x64xf32, #tpu.memory_space<vmem>>, vector<1x64xf32>
    %c1 = arith.constant 1 : index
    %c0_3 = arith.constant 0 : index
    %2 = vector.load %arg6[%c1, %c0_3] : memref<4x64xf32, #tpu.memory_space<vmem>>, vector<1x64xf32>
    %c2 = arith.constant 2 : index
    %c0_4 = arith.constant 0 : index
    %3 = vector.load %arg6[%c2, %c0_4] : memref<4x64xf32, #tpu.memory_space<vmem>>, vector<1x64xf32>
    %c3 = arith.constant 3 : index
    %c0_5 = arith.constant 0 : index
    %4 = vector.load %arg6[%c3, %c0_5] : memref<4x64xf32, #tpu.memory_space<vmem>>, vector<1x32xf32>
    %c0_6 = arith.constant 0 : index
    %c0_7 = arith.constant 0 : index
    %5 = vector.load %arg2[%c0_6, %c0_7] : memref<24x80xf32, #tpu.memory_space<vmem>>, vector<24x80xf32>
    %cst = arith.constant dense<0.000000e+00> : vector<8x80xf32>
    %6 = tpu.matmul %0, %5, %cst {dimension_numbers = #tpu.dot_dimension_numbers<[1], [0], [0], [1], [0, 0, 1, 1], [], []>} : vector<8x24xf32>, vector<24x80xf32>, vector<8x80xf32> -> vector<8x80xf32>
    %7 = vector.extract_strided_slice %6 {offsets = [0, 0], sizes = [8, 16], strides = [1, 1]} : vector<8x80xf32> to vector<8x16xf32>
    %8 = vector.extract_strided_slice %6 {offsets = [0, 16], sizes = [8, 64], strides = [1, 1]} : vector<8x80xf32> to vector<8x64xf32>
    %9 = vector.broadcast %1 : vector<1x64xf32> to vector<8x64xf32>
    %10 = arith.addf %8, %9 : vector<8x64xf32>
    %cst_8 = arith.constant 0.000000e+00 : f32
    %11 = vector.broadcast %cst_8 : f32 to vector<8x64xf32>
    %12 = arith.maximumf %10, %11 : vector<8x64xf32>
    %c0_9 = arith.constant 0 : index
    %c0_10 = arith.constant 0 : index
    %13 = vector.load %arg3[%c0_9, %c0_10] : memref<128x64xf32, #tpu.memory_space<vmem>>, vector<64x64xf32>
    %cst_11 = arith.constant dense<0.000000e+00> : vector<8x64xf32>
    %14 = tpu.matmul %12, %13, %cst_11 {dimension_numbers = #tpu.dot_dimension_numbers<[1], [0], [0], [1], [0, 0, 1, 1], [], []>} : vector<8x64xf32>, vector<64x64xf32>, vector<8x64xf32> -> vector<8x64xf32>
    %15 = vector.broadcast %2 : vector<1x64xf32> to vector<8x64xf32>
    %16 = arith.addf %14, %15 : vector<8x64xf32>
    %cst_12 = arith.constant 0.000000e+00 : f32
    %17 = vector.broadcast %cst_12 : f32 to vector<8x64xf32>
    %18 = arith.maximumf %16, %17 : vector<8x64xf32>
    %c64 = arith.constant 64 : index
    %c0_13 = arith.constant 0 : index
    %19 = vector.load %arg3[%c64, %c0_13] : memref<128x64xf32, #tpu.memory_space<vmem>>, vector<64x64xf32>
    %cst_14 = arith.constant dense<0.000000e+00> : vector<8x64xf32>
    %20 = tpu.matmul %18, %19, %cst_14 {dimension_numbers = #tpu.dot_dimension_numbers<[1], [0], [0], [1], [0, 0, 1, 1], [], []>} : vector<8x64xf32>, vector<64x64xf32>, vector<8x64xf32> -> vector<8x64xf32>
    %21 = vector.broadcast %3 : vector<1x64xf32> to vector<8x64xf32>
    %22 = arith.addf %20, %21 : vector<8x64xf32>
    %cst_15 = arith.constant 0.000000e+00 : f32
    %23 = vector.broadcast %cst_15 : f32 to vector<8x64xf32>
    %24 = arith.maximumf %22, %23 : vector<8x64xf32>
    %c0_16 = arith.constant 0 : index
    %c0_17 = arith.constant 0 : index
    %25 = vector.load %arg4[%c0_16, %c0_17] : memref<64x32xf32, #tpu.memory_space<vmem>>, vector<64x32xf32>
    %cst_18 = arith.constant dense<0.000000e+00> : vector<8x32xf32>
    %26 = tpu.matmul %24, %25, %cst_18 {dimension_numbers = #tpu.dot_dimension_numbers<[1], [0], [0], [1], [0, 0, 1, 1], [], []>} : vector<8x64xf32>, vector<64x32xf32>, vector<8x32xf32> -> vector<8x32xf32>
    %27 = vector.broadcast %4 : vector<1x32xf32> to vector<8x32xf32>
    %28 = arith.addf %26, %27 : vector<8x32xf32>
    %29 = vector.extract_strided_slice %28 {offsets = [0, 0], sizes = [8, 16], strides = [1, 1]} : vector<8x32xf32> to vector<8x16xf32>
    %30 = math.tanh %29 : vector<8x16xf32>
    %31 = vector.extract_strided_slice %28 {offsets = [0, 16], sizes = [8, 16], strides = [1, 1]} : vector<8x32xf32> to vector<8x16xf32>
    %32 = math.exp %30 : vector<8x16xf32>
    %33 = arith.mulf %7, %32 : vector<8x16xf32>
    %34 = arith.addf %33, %31 : vector<8x16xf32>
    %c0_19 = arith.constant 0 : index
    %c0_20 = arith.constant 0 : index
    %35 = vector.load %arg5[%c0_19, %c0_20] : memref<16x16xf32, #tpu.memory_space<vmem>>, vector<16x16xf32>
    %cst_21 = arith.constant dense<0.000000e+00> : vector<8x16xf32>
    %36 = tpu.matmul %34, %35, %cst_21 {dimension_numbers = #tpu.dot_dimension_numbers<[1], [0], [0], [1], [0, 0, 1, 1], [], []>} : vector<8x16xf32>, vector<16x16xf32>, vector<8x16xf32> -> vector<8x16xf32>
    %c0_22 = arith.constant 0 : index
    %c0_23 = arith.constant 0 : index
    %37 = vector.load %arg7[%c0_22, %c0_23] : memref<8x16xf32, #tpu.memory_space<vmem>>, vector<8x16xf32>
    tpu.vector_store %arg7[%c0_22, %c0_23], %36 {strides = array<i32>} : memref<8x16xf32, #tpu.memory_space<vmem>>, vector<8x16xf32>,
    %cst_24 = arith.constant dense<0.000000e+00> : vector<8xf32>
    %38 = vector.multi_reduction <add>, %30, %cst_24 [1] : vector<8x16xf32> to vector<8xf32>
    %39 = vector.shape_cast %38 : vector<8xf32> to vector<8x1xf32>
    %c0_25 = arith.constant 0 : index
    %c0_26 = arith.constant 0 : index
    %40 = vector.load %arg8[%c0_25, %c0_26] : memref<8x1xf32, #tpu.memory_space<vmem>>, vector<8x1xf32>
    tpu.vector_store %arg8[%c0_25, %c0_26], %39 {strides = array<i32>} : memref<8x1xf32, #tpu.memory_space<vmem>>, vector<8x1xf32>,
    return
  }
  func.func @transform_0(%arg0: i32) -> (i32, i32) {
    %c0_i32 = arith.constant 0 : i32
    %c0_i32_0 = arith.constant 0 : i32
    return %arg0, %c0_i32 : i32, i32
  }
  func.func @transform_1(%arg0: i32) -> (i32, i32) {
    %c0_i32 = arith.constant 0 : i32
    %c0_i32_0 = arith.constant 0 : i32
    %c0_i32_1 = arith.constant 0 : i32
    return %c0_i32, %c0_i32_0 : i32, i32
  }
  func.func @transform_2(%arg0: i32) -> (i32, i32) {
    %c0_i32 = arith.constant 0 : i32
    %c0_i32_0 = arith.constant 0 : i32
    %c0_i32_1 = arith.constant 0 : i32
    return %c0_i32, %c0_i32_0 : i32, i32
  }
  func.func @transform_3(%arg0: i32) -> (i32, i32) {
    %c0_i32 = arith.constant 0 : i32
    %c0_i32_0 = arith.constant 0 : i32
    %c0_i32_1 = arith.constant 0 : i32
    return %c0_i32, %c0_i32_0 : i32, i32
  }
  func.func @transform_4(%arg0: i32) -> (i32, i32) {
    %c0_i32 = arith.constant 0 : i32
    %c0_i32_0 = arith.constant 0 : i32
    %c0_i32_1 = arith.constant 0 : i32
    return %c0_i32, %c0_i32_0 : i32, i32
  }
  func.func @transform_5(%arg0: i32) -> (i32, i32) {
    %c0_i32 = arith.constant 0 : i32
    %c0_i32_0 = arith.constant 0 : i32
    %c0_i32_1 = arith.constant 0 : i32
    return %c0_i32, %c0_i32_0 : i32, i32
  }
  func.func @transform_6(%arg0: i32) -> (i32, i32) {
    %c0_i32 = arith.constant 0 : i32
    %c0_i32_0 = arith.constant 0 : i32
    return %arg0, %c0_i32 : i32, i32
  }
  func.func @transform_7(%arg0: i32) -> (i32, i32) {
    %c0_i32 = arith.constant 0 : i32
    %c0_i32_0 = arith.constant 0 : i32
    return %arg0, %c0_i32 : i32, i32
  }
}

</mosaic_0001>

<llo_original>
// kernel: tpu_custom_call.1
$region0: #{tpu_custom_call.1}
  #allocation0 [shape = 'u32[]', space=smem, size = 0x4, offset = 0x4, fixed_abs, tag = 'smem constant byte address 0x4 - core index']
  #allocation1 [shape = 'u32[144,128]{1,0:T(1,128)}', space=vmem, size = 0x12000, scoped, tag = 'internal scratch']
  %s0 = inlined_call_operand.vmem [shape: f32[8,24], index: 0, kind: input, shape index: {}]
  %s1 = inlined_call_operand.vmem [shape: f32[24,80], index: 1, kind: input, shape index: {}]
  %s2 = inlined_call_operand.vmem [shape: f32[128,64], index: 2, kind: input, shape index: {}]
  %s3 = inlined_call_operand.vmem [shape: f32[64,32], index: 3, kind: input, shape index: {}]
  %s4 = inlined_call_operand.vmem [shape: f32[16,16], index: 4, kind: input, shape index: {}]
  %s5 = inlined_call_operand.vmem [shape: f32[4,64], index: 5, kind: input, shape index: {}]
  %s6 = inlined_call_operand.hbm [shape: f32[8,16], index: 6, kind: output, shape index: {0}]
  %s7 = inlined_call_operand.vmem [shape: f32[8,1], index: 7, kind: output, shape index: {1}]
  %8 = xla_tuple %s6, %s7
  %s9 = sld [smem:[#allocation0]]
  $region42: #{tpu_custom_call.1} parent=0
    _
  %s11 = ssub.s32 1, %s9
  %s12 = scalar_select 0, %s11, %s9
  $region1: #{tpu_custom_call.1} parent=0
    #allocation2 [shape = 'u8[4096]{0}', space=vmem, size = 0x1000, scoped, tag = 'output window, operand 0, single buffered']
    #allocation3 [shape = 's32[1]{0}', space=sflag, size = 0x4, scoped, tag = 'scoped memory for tpu_custom_call.1']
    %13 = vsyncpa [#allocation3], 0
    // Predicated region
    $region2: #{tpu_custom_call.1} parent=1 // pred_check
      _
    $region3: #{tpu_custom_call.1} parent=1 // pred_check_branch
      %15 = sbr.rel (0) target = $region5
    $region4: #{tpu_custom_call.1} parent=1 // pred_region
      _
    $region5: #{tpu_custom_call.1} parent=1 // pred_fallthru
      _
    // Predicated region
    $region6: #{tpu_custom_call.1} parent=1 // pred_check
      _
    $region7: #{tpu_custom_call.1} parent=1 // pred_check_branch
      %17 = sbr.rel (0) target = $region9
    $region8: #{tpu_custom_call.1} parent=1 // pred_region
      _
    $region9: #{tpu_custom_call.1} parent=1 // pred_fallthru
      _
    // Predicated region
    $region10: #{tpu_custom_call.1} parent=1 // pred_check
      _
    $region11: #{tpu_custom_call.1} parent=1 // pred_check_branch
      %19 = sbr.rel (0) target = $region13
    $region12: #{tpu_custom_call.1} parent=1 // pred_region
      _
    $region13: #{tpu_custom_call.1} parent=1 // pred_fallthru
      _
    // Predicated region
    $region14: #{tpu_custom_call.1} parent=1 // pred_check
      _
    $region15: #{tpu_custom_call.1} parent=1 // pred_check_branch
      %21 = sbr.rel (0) target = $region17
    $region16: #{tpu_custom_call.1} parent=1 // pred_region
      _
    $region17: #{tpu_custom_call.1} parent=1 // pred_fallthru
      _
    // Predicated region
    $region18: #{tpu_custom_call.1} parent=1 // pred_check
      _
    $region19: #{tpu_custom_call.1} parent=1 // pred_check_branch
      %23 = sbr.rel (0) target = $region21
    $region20: #{tpu_custom_call.1} parent=1 // pred_region
      _
    $region21: #{tpu_custom_call.1} parent=1 // pred_fallthru
      _
    // Predicated region
    $region22: #{tpu_custom_call.1} parent=1 // pred_check
      _
    $region23: #{tpu_custom_call.1} parent=1 // pred_check_branch
      %25 = sbr.rel (0) target = $region25
    $region24: #{tpu_custom_call.1} parent=1 // pred_region
      _
    $region25: #{tpu_custom_call.1} parent=1 // pred_fallthru
      _
    %v26 = vld [vmem:[%s0] sm:$0xff]
    %v27 = vld [vmem:[%s5] sm:$0x1]
    %v28 = vld [vmem:[%s5 + $0x1] sm:$0x1]
    %v29 = vld [vmem:[%s5 + $0x2] sm:$0x1]
    %v30 = vld [vmem:[%s5 + $0x3] sm:$0x1]
    %v31 = vld [vmem:[%s1] sm:$0xff]
    %v32 = vld [vmem:[%s1 + $0x8] sm:$0xff]
    %v33 = vld [vmem:[%s1 + $0x10] sm:$0xff]
    %vm34 = vcmask 195584
    %v36 = vsel %vm34, %v26, 0
    %38 = vmatprep.subr.mxu0 0.0
    %39 = vmatpush1.msra.mxu0 %v31
    %40 = vmatprep.subr.mxu0 0.0
    %41 = vmatpush1.msra.mxu0 %v32
    %42 = vmatprep.subr.mxu0 0.0
    %43 = vmatpush1.msra.mxu0 %v33
    %44 = vmatprep.subr.mxu0 0.0
    %45 = vmatpush1.msra.mxu0 0.0
    %46 = vmatprep.subr.mxu0 0.0
    %47 = vmatpush1.msra.mxu0 0.0
    %48 = vmatprep.subr.mxu0 0.0
    %49 = vmatpush1.msra.mxu0 0.0
    %50 = vmatprep.subr.mxu0 0.0
    %51 = vmatpush1.msra.mxu0 0.0
    %52 = vmatprep.subr.mxu0 0.0
    %53 = vmatpush1.msra.mxu0 0.0
    %54 = vmatprep.subr.mxu0 0.0
    %55 = vmatpush1.msra.mxu0 0.0
    %56 = vmatprep.subr.mxu0 0.0
    %57 = vmatpush1.msra.mxu0 0.0
    %58 = vmatprep.subr.mxu0 0.0
    %59 = vmatpush1.msra.mxu0 0.0
    %60 = vmatprep.subr.mxu0 0.0
    %61 = vmatpush1.msra.mxu0 0.0
    %62 = vmatprep.subr.mxu0 0.0
    %63 = vmatpush1.msra.mxu0 0.0
    %64 = vmatprep.subr.mxu0 0.0
    %65 = vmatpush1.msra.mxu0 0.0
    %66 = vmatprep.subr.mxu0 0.0
    %67 = vmatpush1.msra.mxu0 0.0
    %68 = vmatprep.subr.mxu0 0.0
    %69 = vmatpush1.msra.mxu0 0.0
    %70 = vmatprep.subr.mxu0 0.0
    %71 = vmatpush1.msra.mxu0 0.0
    %72 = vmatprep.subr.mxu0 0.0
    %73 = vmatpush1.msra.mxu0 0.0
    %74 = vmatprep.subr.mxu0 0.0
    %75 = vmatpush1.msra.mxu0 0.0
    %76 = vmatprep.subr.mxu0 0.0
    %77 = vmatpush1.msra.mxu0 0.0
    %78 = vmatprep.subr.mxu0 0.0
    %79 = vmatpush1.msra.mxu0 0.0
    %80 = vmatprep.subr.mxu0 0.0
    %81 = vmatpush1.msra.mxu0 0.0
    %82 = vmatprep.subr.mxu0 0.0
    %83 = vmatpush1.msra.mxu0 0.0
    %84 = vmatprep.subr.mxu0 0.0
    %85 = vmatpush1.msra.mxu0 0.0
    %86 = vmatprep.subr.mxu0 0.0
    %87 = vmatpush1.msra.mxu0 0.0
    %88 = vmatprep.subr.mxu0 0.0
    %89 = vmatpush1.msra.mxu0 0.0
    %90 = vmatprep.subr.mxu0 0.0
    %91 = vmatpush1.msra.mxu0 0.0
    %92 = vmatprep.subr.mxu0 0.0
    %93 = vmatpush1.msra.mxu0 0.0
    %94 = vmatprep.subr.mxu0 0.0
    %95 = vmatpush1.msra.mxu0 0.0
    %96 = vmatprep.subr.mxu0 0.0
    %97 = vmatpush1.msra.mxu0 0.0
    %98 = vmatprep.subr.mxu0 0.0
    %99 = vmatpush1.msra.mxu0 0.0
    %100 = vmatprep.subr.mxu0 0.0
    %101 = vmatpush1.msra.mxu0 0.0
    %102 = vmatprep.mubr.f32.mxu0 0.0
    %103 = vmatmul.mubr.f32.gmra.mrb[0].mxu0 %v36
    %v104 = vpop.f32.mrb[0].mxu0
    %v105 = vadd.f32 0.0, %v104
    %v106 = vpop.f32.mrb[0].mxu0
    %107 = vdwg.mxu0
    %v108 = vlaneseq
    %v109 = vshrl.u32 %v108, 7
    %v110 = vsub.s32 0, %v109
    %v111 = vrot.slane %v27, %v110
    %113 = vrot.lane.b32.xlu0 %v111, 16
    %v114 = vpop.permute.xlu0 %113
    %v116 = vadd.f32 %v105, %v114
    %v117 = vmax.f32 %v116, 0.0
    %v118 = vld [vmem:[%s2] sm:$0xff]
    %v119 = vld [vmem:[%s2 + $0x8] sm:$0xff]
    %v120 = vld [vmem:[%s2 + $0x10] sm:$0xff]
    %v121 = vld [vmem:[%s2 + $0x18] sm:$0xff]
    %v122 = vld [vmem:[%s2 + $0x20] sm:$0xff]
    %v123 = vld [vmem:[%s2 + $0x28] sm:$0xff]
    %v124 = vld [vmem:[%s2 + $0x30] sm:$0xff]
    %v125 = vld [vmem:[%s2 + $0x38] sm:$0xff]
    %v126 = vlaneseq
    %v127 = vshrl.u32 %v126, 7
    %v128 = vsub.s32 0, %v127
    %v129 = vrot.slane %v28, %v128
    %131 = vrot.lane.b32.xlu0 %v117, 112
    %v132 = vpop.permute.xlu0 %131
    %vm133 = vcmask 523264
    %v134 = vsel %vm133, %v132, 0
    %136 = vmatprep.subr.mxu0 0.0
    %137 = vmatpush1.msra.mxu0 %v118
    %138 = vmatprep.subr.mxu0 0.0
    %139 = vmatpush1.msra.mxu0 %v119
    %140 = vmatprep.subr.mxu0 0.0
    %141 = vmatpush1.msra.mxu0 %v120
    %142 = vmatprep.subr.mxu0 0.0
    %143 = vmatpush1.msra.mxu0 %v121
    %144 = vmatprep.subr.mxu0 0.0
    %145 = vmatpush1.msra.mxu0 %v122
    %146 = vmatprep.subr.mxu0 0.0
    %147 = vmatpush1.msra.mxu0 %v123
    %148 = vmatprep.subr.mxu0 0.0
    %149 = vmatpush1.msra.mxu0 %v124
    %150 = vmatprep.subr.mxu0 0.0
    %151 = vmatpush1.msra.mxu0 %v125
    %152 = vmatprep.subr.mxu0 0.0
    %153 = vmatpush1.msra.mxu0 0.0
    %154 = vmatprep.subr.mxu0 0.0
    %155 = vmatpush1.msra.mxu0 0.0
    %156 = vmatprep.subr.mxu0 0.0
    %157 = vmatpush1.msra.mxu0 0.0
    %158 = vmatprep.subr.mxu0 0.0
    %159 = vmatpush1.msra.mxu0 0.0
    %160 = vmatprep.subr.mxu0 0.0
    %161 = vmatpush1.msra.mxu0 0.0
    %162 = vmatprep.subr.mxu0 0.0
    %163 = vmatpush1.msra.mxu0 0.0
    %164 = vmatprep.subr.mxu0 0.0
    %165 = vmatpush1.msra.mxu0 0.0
    %166 = vmatprep.subr.mxu0 0.0
    %167 = vmatpush1.msra.mxu0 0.0
    %168 = vmatprep.subr.mxu0 0.0
    %169 = vmatpush1.msra.mxu0 0.0
    %170 = vmatprep.subr.mxu0 0.0
    %171 = vmatpush1.msra.mxu0 0.0
    %172 = vmatprep.subr.mxu0 0.0
    %173 = vmatpush1.msra.mxu0 0.0
    %174 = vmatprep.subr.mxu0 0.0
    %175 = vmatpush1.msra.mxu0 0.0
    %176 = vmatprep.subr.mxu0 0.0
    %177 = vmatpush1.msra.mxu0 0.0
    %178 = vmatprep.subr.mxu0 0.0
    %179 = vmatpush1.msra.mxu0 0.0
    %180 = vmatprep.subr.mxu0 0.0
    %181 = vmatpush1.msra.mxu0 0.0
    %182 = vmatprep.subr.mxu0 0.0
    %183 = vmatpush1.msra.mxu0 0.0
    %184 = vmatprep.subr.mxu0 0.0
    %185 = vmatpush1.msra.mxu0 0.0
    %186 = vmatprep.subr.mxu0 0.0
    %187 = vmatpush1.msra.mxu0 0.0
    %188 = vmatprep.subr.mxu0 0.0
    %189 = vmatpush1.msra.mxu0 0.0
    %190 = vmatprep.subr.mxu0 0.0
    %191 = vmatpush1.msra.mxu0 0.0
    %192 = vmatprep.subr.mxu0 0.0
    %193 = vmatpush1.msra.mxu0 0.0
    %194 = vmatprep.subr.mxu0 0.0
    %195 = vmatpush1.msra.mxu0 0.0
    %196 = vmatprep.subr.mxu0 0.0
    %197 = vmatpush1.msra.mxu0 0.0
    %198 = vmatprep.subr.mxu0 0.0
    %199 = vmatpush1.msra.mxu0 0.0
    %200 = vmatprep.mubr.f32.mxu0 0.0
    %201 = vmatmul.mubr.f32.gmra.mrb[0].mxu0 %v134
    %v202 = vpop.f32.mrb[0].mxu0
    %v203 = vadd.f32 %v129, %v202
    %v204 = vpop.f32.mrb[0].mxu0
    %205 = vdwg.mxu0
    %v206 = vmax.f32 %v203, 0.0
    %v207 = vld [vmem:[%s2 + $0x40] sm:$0xff]
    %v208 = vld [vmem:[%s2 + $0x48] sm:$0xff]
    %v209 = vld [vmem:[%s2 + $0x50] sm:$0xff]
    %v210 = vld [vmem:[%s2 + $0x58] sm:$0xff]
    %v211 = vld [vmem:[%s2 + $0x60] sm:$0xff]
    %v212 = vld [vmem:[%s2 + $0x68] sm:$0xff]
    %v213 = vld [vmem:[%s2 + $0x70] sm:$0xff]
    %v214 = vld [vmem:[%s2 + $0x78] sm:$0xff]
    %v215 = vlaneseq
    %v216 = vshrl.u32 %v215, 7
    %v217 = vsub.s32 0, %v216
    %v218 = vrot.slane %v29, %v217
    %v220 = vsel %vm133, %v206, 0
    %222 = vmatprep.subr.mxu0 0.0
    %223 = vmatpush1.msra.mxu0 %v207
    %224 = vmatprep.subr.mxu0 0.0
    %225 = vmatpush1.msra.mxu0 %v208
    %226 = vmatprep.subr.mxu0 0.0
    %227 = vmatpush1.msra.mxu0 %v209
    %228 = vmatprep.subr.mxu0 0.0
    %229 = vmatpush1.msra.mxu0 %v210
    %230 = vmatprep.subr.mxu0 0.0
    %231 = vmatpush1.msra.mxu0 %v211
    %232 = vmatprep.subr.mxu0 0.0
    %233 = vmatpush1.msra.mxu0 %v212
    %234 = vmatprep.subr.mxu0 0.0
    %235 = vmatpush1.msra.mxu0 %v213
    %236 = vmatprep.subr.mxu0 0.0
    %237 = vmatpush1.msra.mxu0 %v214
    %238 = vmatprep.subr.mxu0 0.0
    %239 = vmatpush1.msra.mxu0 0.0
    %240 = vmatprep.subr.mxu0 0.0
    %241 = vmatpush1.msra.mxu0 0.0
    %242 = vmatprep.subr.mxu0 0.0
    %243 = vmatpush1.msra.mxu0 0.0
    %244 = vmatprep.subr.mxu0 0.0
    %245 = vmatpush1.msra.mxu0 0.0
    %246 = vmatprep.subr.mxu0 0.0
    %247 = vmatpush1.msra.mxu0 0.0
    %248 = vmatprep.subr.mxu0 0.0
    %249 = vmatpush1.msra.mxu0 0.0
    %250 = vmatprep.subr.mxu0 0.0
    %251 = vmatpush1.msra.mxu0 0.0
    %252 = vmatprep.subr.mxu0 0.0
    %253 = vmatpush1.msra.mxu0 0.0
    %254 = vmatprep.subr.mxu0 0.0
    %255 = vmatpush1.msra.mxu0 0.0
    %256 = vmatprep.subr.mxu0 0.0
    %257 = vmatpush1.msra.mxu0 0.0
    %258 = vmatprep.subr.mxu0 0.0
    %259 = vmatpush1.msra.mxu0 0.0
    %260 = vmatprep.subr.mxu0 0.0
    %261 = vmatpush1.msra.mxu0 0.0
    %262 = vmatprep.subr.mxu0 0.0
    %263 = vmatpush1.msra.mxu0 0.0
    %264 = vmatprep.subr.mxu0 0.0
    %265 = vmatpush1.msra.mxu0 0.0
    %266 = vmatprep.subr.mxu0 0.0
    %267 = vmatpush1.msra.mxu0 0.0
    %268 = vmatprep.subr.mxu0 0.0
    %269 = vmatpush1.msra.mxu0 0.0
    %270 = vmatprep.subr.mxu0 0.0
    %271 = vmatpush1.msra.mxu0 0.0
    %272 = vmatprep.subr.mxu0 0.0
    %273 = vmatpush1.msra.mxu0 0.0
    %274 = vmatprep.subr.mxu0 0.0
    %275 = vmatpush1.msra.mxu0 0.0
    %276 = vmatprep.subr.mxu0 0.0
    %277 = vmatpush1.msra.mxu0 0.0
    %278 = vmatprep.subr.mxu0 0.0
    %279 = vmatpush1.msra.mxu0 0.0
    %280 = vmatprep.subr.mxu0 0.0
    %281 = vmatpush1.msra.mxu0 0.0
    %282 = vmatprep.subr.mxu0 0.0
    %283 = vmatpush1.msra.mxu0 0.0
    %284 = vmatprep.subr.mxu0 0.0
    %285 = vmatpush1.msra.mxu0 0.0
    %286 = vmatprep.mubr.f32.mxu0 0.0
    %287 = vmatmul.mubr.f32.gmra.mrb[0].mxu0 %v220
    %v288 = vpop.f32.mrb[0].mxu0
    %v289 = vadd.f32 %v218, %v288
    %v290 = vpop.f32.mrb[0].mxu0
    %291 = vdwg.mxu0
    %v292 = vmax.f32 %v289, 0.0
    %v293 = vld [vmem:[%s3] sm:$0xff]
    %v294 = vld [vmem:[%s3 + $0x8] sm:$0xff]
    %v295 = vld [vmem:[%s3 + $0x10] sm:$0xff]
    %v296 = vld [vmem:[%s3 + $0x18] sm:$0xff]
    %v297 = vld [vmem:[%s3 + $0x20] sm:$0xff]
    %v298 = vld [vmem:[%s3 + $0x28] sm:$0xff]
    %v299 = vld [vmem:[%s3 + $0x30] sm:$0xff]
    %v300 = vld [vmem:[%s3 + $0x38] sm:$0xff]
    %v301 = vlaneseq
    %v302 = vshrl.u32 %v301, 7
    %v303 = vsub.s32 0, %v302
    %v304 = vrot.slane %v30, %v303
    %v306 = vsel %vm133, %v292, 0
    %308 = vmatprep.subr.mxu0 0.0
    %309 = vmatpush1.msra.mxu0 %v293
    %310 = vmatprep.subr.mxu0 0.0
    %311 = vmatpush1.msra.mxu0 %v294
    %312 = vmatprep.subr.mxu0 0.0
    %313 = vmatpush1.msra.mxu0 %v295
    %314 = vmatprep.subr.mxu0 0.0
    %315 = vmatpush1.msra.mxu0 %v296
    %316 = vmatprep.subr.mxu0 0.0
    %317 = vmatpush1.msra.mxu0 %v297
    %318 = vmatprep.subr.mxu0 0.0
    %319 = vmatpush1.msra.mxu0 %v298
    %320 = vmatprep.subr.mxu0 0.0
    %321 = vmatpush1.msra.mxu0 %v299
    %322 = vmatprep.subr.mxu0 0.0
    %323 = vmatpush1.msra.mxu0 %v300
    %324 = vmatprep.subr.mxu0 0.0
    %325 = vmatpush1.msra.mxu0 0.0
    %326 = vmatprep.subr.mxu0 0.0
    %327 = vmatpush1.msra.mxu0 0.0
    %328 = vmatprep.subr.mxu0 0.0
    %329 = vmatpush1.msra.mxu0 0.0
    %330 = vmatprep.subr.mxu0 0.0
    %331 = vmatpush1.msra.mxu0 0.0
    %332 = vmatprep.subr.mxu0 0.0
    %333 = vmatpush1.msra.mxu0 0.0
    %334 = vmatprep.subr.mxu0 0.0
    %335 = vmatpush1.msra.mxu0 0.0
    %336 = vmatprep.subr.mxu0 0.0
    %337 = vmatpush1.msra.mxu0 0.0
    %338 = vmatprep.subr.mxu0 0.0
    %339 = vmatpush1.msra.mxu0 0.0
    %340 = vmatprep.subr.mxu0 0.0
    %341 = vmatpush1.msra.mxu0 0.0
    %342 = vmatprep.subr.mxu0 0.0
    %343 = vmatpush1.msra.mxu0 0.0
    %344 = vmatprep.subr.mxu0 0.0
    %345 = vmatpush1.msra.mxu0 0.0
    %346 = vmatprep.subr.mxu0 0.0
    %347 = vmatpush1.msra.mxu0 0.0
    %348 = vmatprep.subr.mxu0 0.0
    %349 = vmatpush1.msra.mxu0 0.0
    %350 = vmatprep.subr.mxu0 0.0
    %351 = vmatpush1.msra.mxu0 0.0
    %352 = vmatprep.subr.mxu0 0.0
    %353 = vmatpush1.msra.mxu0 0.0
    %354 = vmatprep.subr.mxu0 0.0
    %355 = vmatpush1.msra.mxu0 0.0
    %356 = vmatprep.subr.mxu0 0.0
    %357 = vmatpush1.msra.mxu0 0.0
    %358 = vmatprep.subr.mxu0 0.0
    %359 = vmatpush1.msra.mxu0 0.0
    %360 = vmatprep.subr.mxu0 0.0
    %361 = vmatpush1.msra.mxu0 0.0
    %362 = vmatprep.subr.mxu0 0.0
    %363 = vmatpush1.msra.mxu0 0.0
    %364 = vmatprep.subr.mxu0 0.0
    %365 = vmatpush1.msra.mxu0 0.0
    %366 = vmatprep.subr.mxu0 0.0
    %367 = vmatpush1.msra.mxu0 0.0
    %368 = vmatprep.subr.mxu0 0.0
    %369 = vmatpush1.msra.mxu0 0.0
    %370 = vmatprep.subr.mxu0 0.0
    %371 = vmatpush1.msra.mxu0 0.0
    %372 = vmatprep.mubr.f32.mxu0 0.0
    %373 = vmatmul.mubr.f32.gmra.mrb[0].mxu0 %v306
    %v374 = vpop.f32.mrb[0].mxu0
    %v375 = vadd.f32 %v304, %v374
    %v376 = vpop.f32.mrb[0].mxu0
    %377 = vdwg.mxu0
    %v378 = vtanh.pop %v375
    %v379 = vmul.f32 %v378, 1.442695
    %v380 = vpow.pop %v379
    %v381 = vmul.f32 %v105, %v380
    %383 = vrot.lane.b32.xlu0 %v375, 112
    %v384 = vpop.permute.xlu0 %383
    %v386 = vadd.f32 %v381, %v384
    %v387 = vld [vmem:[%s4] sm:$0xff]
    %v388 = vld [vmem:[%s4 + $0x8] sm:$0xff]
    %vm389 = vcmask 130048
    %v391 = vsel %vm389, %v386, 0
    %393 = vmatprep.subr.mxu0 0.0
    %394 = vmatpush1.msra.mxu0 %v387
    %395 = vmatprep.subr.mxu0 0.0
    %396 = vmatpush1.msra.mxu0 %v388
    %397 = vmatprep.subr.mxu0 0.0
    %398 = vmatpush1.msra.mxu0 0.0
    %399 = vmatprep.subr.mxu0 0.0
    %400 = vmatpush1.msra.mxu0 0.0
    %401 = vmatprep.subr.mxu0 0.0
    %402 = vmatpush1.msra.mxu0 0.0
    %403 = vmatprep.subr.mxu0 0.0
    %404 = vmatpush1.msra.mxu0 0.0
    %405 = vmatprep.subr.mxu0 0.0
    %406 = vmatpush1.msra.mxu0 0.0
    %407 = vmatprep.subr.mxu0 0.0
    %408 = vmatpush1.msra.mxu0 0.0
    %409 = vmatprep.subr.mxu0 0.0
    %410 = vmatpush1.msra.mxu0 0.0
    %411 = vmatprep.subr.mxu0 0.0
    %412 = vmatpush1.msra.mxu0 0.0
    %413 = vmatprep.subr.mxu0 0.0
    %414 = vmatpush1.msra.mxu0 0.0
    %415 = vmatprep.subr.mxu0 0.0
    %416 = vmatpush1.msra.mxu0 0.0
    %417 = vmatprep.subr.mxu0 0.0
    %418 = vmatpush1.msra.mxu0 0.0
    %419 = vmatprep.subr.mxu0 0.0
    %420 = vmatpush1.msra.mxu0 0.0
    %421 = vmatprep.subr.mxu0 0.0
    %422 = vmatpush1.msra.mxu0 0.0
    %423 = vmatprep.subr.mxu0 0.0
    %424 = vmatpush1.msra.mxu0 0.0
    %425 = vmatprep.subr.mxu0 0.0
    %426 = vmatpush1.msra.mxu0 0.0
    %427 = vmatprep.subr.mxu0 0.0
    %428 = vmatpush1.msra.mxu0 0.0
    %429 = vmatprep.subr.mxu0 0.0
    %430 = vmatpush1.msra.mxu0 0.0
    %431 = vmatprep.subr.mxu0 0.0
    %432 = vmatpush1.msra.mxu0 0.0
    %433 = vmatprep.subr.mxu0 0.0
    %434 = vmatpush1.msra.mxu0 0.0
    %435 = vmatprep.subr.mxu0 0.0
    %436 = vmatpush1.msra.mxu0 0.0
    %437 = vmatprep.subr.mxu0 0.0
    %438 = vmatpush1.msra.mxu0 0.0
    %439 = vmatprep.subr.mxu0 0.0
    %440 = vmatpush1.msra.mxu0 0.0
    %441 = vmatprep.subr.mxu0 0.0
    %442 = vmatpush1.msra.mxu0 0.0
    %443 = vmatprep.subr.mxu0 0.0
    %444 = vmatpush1.msra.mxu0 0.0
    %445 = vmatprep.subr.mxu0 0.0
    %446 = vmatpush1.msra.mxu0 0.0
    %447 = vmatprep.subr.mxu0 0.0
    %448 = vmatpush1.msra.mxu0 0.0
    %449 = vmatprep.subr.mxu0 0.0
    %450 = vmatpush1.msra.mxu0 0.0
    %451 = vmatprep.subr.mxu0 0.0
    %452 = vmatpush1.msra.mxu0 0.0
    %453 = vmatprep.subr.mxu0 0.0
    %454 = vmatpush1.msra.mxu0 0.0
    %455 = vmatprep.subr.mxu0 0.0
    %456 = vmatpush1.msra.mxu0 0.0
    %457 = vmatprep.mubr.f32.mxu0 0.0
    %458 = vmatmul.mubr.f32.gmra.mrb[0].mxu0 %v391
    %v459 = vpop.f32.mrb[0].mxu0
    %v460 = vadd.f32 0.0, %v459
    %v461 = vpop.f32.mrb[0].mxu0
    %462 = vdwg.mxu0
    %463 = vst.msk [vmem:[#allocation2] sm:$0xff] %vm389, %v460
    %v464 = vsel %vm389, %v378, 0.0
    %465 = vadd.xlane.f32.xlu0 %v464
    %v466 = vpop.xlane.xlu0 %465
    %vm467 = vcmask 7168
    %468 = vst.msk [vmem:[%s7] sm:$0xff] %vm467, %v466
    // Predicated region
    $region26: #{tpu_custom_call.1} parent=1 // pred_check
      _
    $region27: #{tpu_custom_call.1} parent=1 // pred_check_branch
      %470 = sbr.rel (0) target = $region29
    $region28: #{tpu_custom_call.1} parent=1 // pred_region
      %s472 = ssub.s32 128, 128
      %473 = vsyncadd [#allocation3], %s472
      %s475 = sshll.u32 [#allocation2], 4
      %s476 = int_to_ptr.vmem [resolvable:$true] %s475
      %478 = dma.vmem_to_hbm [thread:$0]  %s476, 128, %s6, [#allocation3]
    $region29: #{tpu_custom_call.1} parent=1 // pred_fallthru
      _
    // Predicated region
    $region30: #{tpu_custom_call.1} parent=1 // pred_check
      _
    $region31: #{tpu_custom_call.1} parent=1 // pred_check_branch
      %480 = sbr.rel (0) target = $region33
    $region32: #{tpu_custom_call.1} parent=1 // pred_region
      _
    $region33: #{tpu_custom_call.1} parent=1 // pred_fallthru
      _
    // Predicated region
    $region34: #{tpu_custom_call.1} parent=1 // pred_check
      _
    $region35: #{tpu_custom_call.1} parent=1 // pred_check_branch
      %482 = sbr.rel (0) target = $region37
    $region36: #{tpu_custom_call.1} parent=1 // pred_region
      %483 = dma.done [#allocation3], 128
    $region37: #{tpu_custom_call.1} parent=1 // pred_fallthru
      _
    // Predicated region
    $region38: #{tpu_custom_call.1} parent=1 // pred_check
      _
    $region39: #{tpu_custom_call.1} parent=1 // pred_check_branch
      %485 = sbr.rel (0) target = $region41
    $region40: #{tpu_custom_call.1} parent=1 // pred_region
      _
    $region41: #{tpu_custom_call.1} parent=1 // pred_fallthru
      _
    %486 = vsyncpa [#allocation3], 1

</llo_original>
